<compile_context>
chip_gen: v7x
topology: tpu7x:2x2x1
jax: 0.10.0
libtpu: 0.0.40
codegen_flags: <defaults>
</compile_context>

<pallas_src>
import functools

import jax
import jax.numpy as jnp
from jax.experimental import pallas as pl
from jax.experimental.pallas import tpu as pltpu


def _fused_convmlp_kernel(x_ref, *args, relu_flags, inner):
    """x_ref: (NB, Cin, TL) slab.  args = [w0, s0, w1, s1, ..., out_ref]."""
    *param_refs, o_ref = args
    nb, _, tl = x_ref.shape
    n_layers = len(relu_flags)
    # Tiny fused weights / BN shifts are VMEM-resident (constant index_maps);
    # load once and reuse for every batch element / lane chunk of this step.
    ws = [param_refs[2 * i][...] for i in range(n_layers)]
    ss = [param_refs[2 * i + 1][...] for i in range(n_layers)]
    for b in range(nb):                       # short static unroll (nb <= 8)
        for c0 in range(0, tl, inner):        # chunking keeps h inside vreg budget
            c1 = min(tl, c0 + inner)
            h = x_ref[b, :, c0:c1].astype(jnp.float32)      # (Cin, chunk)
            for w, s, relu in zip(ws, ss, relu_flags):
                h = jnp.dot(w, h, preferred_element_type=jnp.float32) + s
                if relu:
                    h = jnp.maximum(h, 0.0)
            o_ref[b, :, c0:c1] = h.astype(o_ref.dtype)


def conv_mlp_forward(x, params, *, max_tl=4096, max_nb=8,
                     block_budget_bytes=8 << 20, eps=1e-5):
    """x: (N, C_in, L) float32 in torch NCL layout.  params: list of layer dicts."""
    n, c_in, length = x.shape
    n_layers = len(params)
    relu_flags = tuple(i < n_layers - 1 for i in range(n_layers))  # inactivated_output

    # Fold eval-mode BatchNorm into conv weight / bias (kernel epilogue = +shift).
    fused = []
    for p in params:
        scale = p["gamma"] * jax.lax.rsqrt(p["running_var"] + eps)     # (Cout,)
        shift = p["beta"] - p["running_mean"] * scale                  # (Cout,)
        w = p["weight"][:, :, 0] * scale[:, None]                      # (Cout, Cin)
        fused.append((w.astype(jnp.float32), shift[:, None].astype(jnp.float32)))
    c_out_last = fused[-1][0].shape[0]
    c_max = max(max(w.shape) for w, _ in fused)

    # --- tiling heuristics ----------------------------------------------------
    # L tile: full L per batch element when it fits (one contiguous DMA slab),
    # otherwise a large multiple of 128.  No padding needed: Pallas masks the
    # partial last block and the op is pointwise along L and batch.
    tl = length if length <= max_tl else max_tl
    per_b_bytes = lambda t: (c_in + c_out_last) * t * 4 * 2   # double-buffered in+out
    while per_b_bytes(tl) > block_budget_bytes and tl > 128:
        tl = max(128, ((tl // 2) // 128) * 128)
    # Fold batch elements per step to amortize the ~0.35us per-grid-step overhead.
    nb = max(1, min(n, max_nb, block_budget_bytes // max(1, per_b_bytes(tl))))
    n_lt = pl.cdiv(length, tl)
    # v7x has 2 TensorCores: keep >= 2 grid steps when the problem allows it.
    if n_lt * pl.cdiv(n, nb) < 2 and n >= 2:
        nb = max(1, n // 2)
    # In-kernel lane chunk: keep the live (Cmax, inner) f32 intermediate ~<= 256 KiB.
    inner = min(1024, max(128, ((256 * 1024) // (4 * c_max)) // 128 * 128))

    grid = (pl.cdiv(n, nb), n_lt)
    in_specs = [pl.BlockSpec((nb, c_in, tl), lambda b, l: (b, 0, l))]
    args = [x]
    for w, s in fused:
        co, ci = w.shape
        in_specs.append(pl.BlockSpec((co, ci), lambda b, l: (0, 0)))
        in_specs.append(pl.BlockSpec((co, 1), lambda b, l: (0, 0)))
        args.extend((w, s))

    return pl.pallas_call(
        functools.partial(_fused_convmlp_kernel, relu_flags=relu_flags, inner=inner),
        out_shape=jax.ShapeDtypeStruct((n, c_out_last, length), x.dtype),
        grid_spec=pl.GridSpec(
            grid=grid,
            in_specs=in_specs,
            out_specs=pl.BlockSpec((nb, c_out_last, tl), lambda b, l: (b, 0, l)),
        ),
        compiler_params=pltpu.CompilerParams(
            dimension_semantics=("parallel", "parallel"),
            vmem_limit_bytes=32 * 1024 * 1024),
    )(*args)


def conv_mlp_reference(x, params, eps=1e-5):
    """Plain-JAX reference with module semantics (conv -> eval-BN -> ReLU)."""
    h = x
    n_layers = len(params)
    for i, p in enumerate(params):
        w = p["weight"][:, :, 0]                                       # (Cout, Cin)
        y = jnp.einsum("oc,ncl->nol", w, h)
        scale = p["gamma"] * jax.lax.rsqrt(p["running_var"] + eps)
        shift = p["beta"] - p["running_mean"] * scale
        y = y * scale[None, :, None] + shift[None, :, None]
        if i < n_layers - 1:
            y = jnp.maximum(y, 0.0)
        h = y
    return h


def make_params(key, mlp_spec):
    """Deterministic synthetic params matching ConvMLP.__init__ shapes."""
    params = []
    for i in range(len(mlp_spec) - 1):
        c_in, c_out = mlp_spec[i], mlp_spec[i + 1]
        key, kw, kg, kb, km, kv = jax.random.split(key, 6)
        params.append(dict(
            weight=jax.random.normal(kw, (c_out, c_in, 1), jnp.float32) * 0.2,
            gamma=1.0 + 0.1 * jax.random.normal(kg, (c_out,), jnp.float32),
            beta=0.1 * jax.random.normal(kb, (c_out,), jnp.float32),
            running_mean=0.1 * jax.random.normal(km, (c_out,), jnp.float32),
            running_var=1.0 + 0.1 * jax.random.uniform(kv, (c_out,), jnp.float32),
        ))
    return params


# TODO(synk): init_weights / pretrained checkpoint loading is host-side torch
# machinery with no kernel equivalent; synthetic params are used instead.

if __name__ == "__main__":
    key = jax.random.PRNGKey(0)
    kx, kp, kx2 = jax.random.split(key, 3)

    # ConvMLP(mlp_spec=[4, 32, 16]) -- two Conv1d(k=1)+BN1d layers, ReLU on all
    # but the last (inactivated_output=True).
    mlp_spec = [4, 32, 16]
    params = make_params(kp, mlp_spec)

    fwd = jax.jit(conv_mlp_forward,
                  static_argnames=("max_tl", "max_nb", "block_budget_bytes", "eps"))

    # Tolerance note: TPU f32 matmuls use multi-pass bf16 on the MXU; the in-kernel
    # dot (BN scale folded into w) and the XLA einsum reference may round slightly
    # differently, so use a tolerance that covers that while still catching any
    # structural bug (wrong layer order / missing ReLU / missing BN are >> 5e-3).
    ATOL = RTOL = 5e-3

    # 1) Small single-tile case: N=2, C_in=4, L=16 -> block = full L, grid (2, 1).
    N, L = 2, 16
    x = jax.random.normal(kx, (N, mlp_spec[0], L), jnp.float32)  # NCL
    out = jax.block_until_ready(fwd(x, params))
    ref = conv_mlp_reference(x, params)
    assert out.shape == (N, mlp_spec[-1], L), out.shape
    assert jnp.allclose(out, ref, atol=ATOL, rtol=RTOL), "mismatch vs reference"

    # 2) Ragged everything (no padding / slicing anywhere): N=10 with nb=8 gives a
    #    partial batch block, L=200 with max_tl=128 gives a partial L block.
    N2, L2 = 10, 200
    x2 = jax.random.normal(kx2, (N2, mlp_spec[0], L2), jnp.float32)
    out2 = jax.block_until_ready(fwd(x2, params, max_tl=128))
    ref2 = conv_mlp_reference(x2, params)
    assert out2.shape == (N2, mlp_spec[-1], L2), out2.shape
    assert jnp.allclose(out2, ref2, atol=ATOL, rtol=RTOL), "mismatch (ragged path)"

    print("KERNEL_OK")
</pallas_src>

<mosaic_0001>
module attributes {stable_mosaic.version = 11 : i64} {
  func.func @_fused_convmlp_kernel(%arg0: i32, %arg1: i32, %arg2: memref<1x4x16xf32, #tpu.memory_space<vmem>>, %arg3: memref<32x4xf32, #tpu.memory_space<vmem>>, %arg4: memref<32x1xf32, #tpu.memory_space<vmem>>, %arg5: memref<16x32xf32, #tpu.memory_space<vmem>>, %arg6: memref<16x1xf32, #tpu.memory_space<vmem>>, %arg7: memref<1x16x16xf32, #tpu.memory_space<vmem>>) attributes {dimension_semantics = [#tpu.dimension_semantics<parallel>, #tpu.dimension_semantics<parallel>], iteration_bounds = array<i64: 2, 1>, scalar_prefetch = 0 : i64, scratch_operands = 0 : i64, tpu.core_type = #tpu.core_type<tc>, window_params = [{transform_indices = @transform_0, window_bounds = array<i64: 1, 4, 16>}, {pipeline_mode = #tpu.pipeline_mode<synchronous>, transform_indices = @transform_1, window_bounds = array<i64: 32, 4>}, {pipeline_mode = #tpu.pipeline_mode<synchronous>, transform_indices = @transform_2, window_bounds = array<i64: 32, 1>}, {pipeline_mode = #tpu.pipeline_mode<synchronous>, transform_indices = @transform_3, window_bounds = array<i64: 16, 32>}, {pipeline_mode = #tpu.pipeline_mode<synchronous>, transform_indices = @transform_4, window_bounds = array<i64: 16, 1>}, {transform_indices = @transform_5, window_bounds = array<i64: 1, 16, 16>}]} {
    %c0 = arith.constant 0 : index
    %c0_0 = arith.constant 0 : index
    %0 = vector.load %arg3[%c0, %c0_0] : memref<32x4xf32, #tpu.memory_space<vmem>>, vector<32x4xf32>
    %c0_1 = arith.constant 0 : index
    %c0_2 = arith.constant 0 : index
    %1 = vector.load %arg5[%c0_1, %c0_2] : memref<16x32xf32, #tpu.memory_space<vmem>>, vector<16x32xf32>
    %c0_3 = arith.constant 0 : index
    %c0_4 = arith.constant 0 : index
    %2 = vector.load %arg4[%c0_3, %c0_4] : memref<32x1xf32, #tpu.memory_space<vmem>>, vector<32x1xf32>
    %c0_5 = arith.constant 0 : index
    %c0_6 = arith.constant 0 : index
    %3 = vector.load %arg6[%c0_5, %c0_6] : memref<16x1xf32, #tpu.memory_space<vmem>>, vector<16x1xf32>
    %c0_7 = arith.constant 0 : index
    %c0_8 = arith.constant 0 : index
    %c0_9 = arith.constant 0 : index
    %4 = vector.load %arg2[%c0_7, %c0_8, %c0_9] : memref<1x4x16xf32, #tpu.memory_space<vmem>>, vector<1x4x16xf32>
    %5 = vector.shape_cast %4 : vector<1x4x16xf32> to vector<4x16xf32>
    %cst = arith.constant dense<0.000000e+00> : vector<32x16xf32>
    %6 = tpu.matmul %0, %5, %cst {dimension_numbers = #tpu.dot_dimension_numbers<[1], [0], [0], [1], [0, 0, 1, 1], [], []>} : vector<32x4xf32>, vector<4x16xf32>, vector<32x16xf32> -> vector<32x16xf32>
    %7 = vector.broadcast %2 : vector<32x1xf32> to vector<32x16xf32>
    %8 = arith.addf %6, %7 : vector<32x16xf32>
    %cst_10 = arith.constant 0.000000e+00 : f32
    %9 = vector.broadcast %cst_10 : f32 to vector<32x16xf32>
    %10 = arith.maximumf %8, %9 : vector<32x16xf32>
    %cst_11 = arith.constant dense<0.000000e+00> : vector<16x16xf32>
    %11 = tpu.matmul %1, %10, %cst_11 {dimension_numbers = #tpu.dot_dimension_numbers<[1], [0], [0], [1], [0, 0, 1, 1], [], []>} : vector<16x32xf32>, vector<32x16xf32>, vector<16x16xf32> -> vector<16x16xf32>
    %12 = vector.broadcast %3 : vector<16x1xf32> to vector<16x16xf32>
    %13 = arith.addf %11, %12 : vector<16x16xf32>
    %c0_12 = arith.constant 0 : index
    %c0_13 = arith.constant 0 : index
    %c0_14 = arith.constant 0 : index
    %14 = vector.load %arg7[%c0_12, %c0_13, %c0_14] : memref<1x16x16xf32, #tpu.memory_space<vmem>>, vector<1x16x16xf32>
    %15 = vector.shape_cast %14 : vector<1x16x16xf32> to vector<16x16xf32>
    %16 = vector.shape_cast %13 : vector<16x16xf32> to vector<1x16x16xf32>
    tpu.vector_store %arg7[%c0_12, %c0_13, %c0_14], %16 {strides = array<i32>} : memref<1x16x16xf32, #tpu.memory_space<vmem>>, vector<1x16x16xf32>,
    return
  }
  func.func @transform_0(%arg0: i32, %arg1: i32) -> (i32, i32, i32) {
    %c0_i32 = arith.constant 0 : i32
    %c0_i32_0 = arith.constant 0 : i32
    return %arg0, %c0_i32, %arg1 : i32, i32, i32
  }
  func.func @transform_1(%arg0: i32, %arg1: i32) -> (i32, i32) {
    %c0_i32 = arith.constant 0 : i32
    %c0_i32_0 = arith.constant 0 : i32
    %c0_i32_1 = arith.constant 0 : i32
    return %c0_i32, %c0_i32_0 : i32, i32
  }
  func.func @transform_2(%arg0: i32, %arg1: i32) -> (i32, i32) {
    %c0_i32 = arith.constant 0 : i32
    %c0_i32_0 = arith.constant 0 : i32
    %c0_i32_1 = arith.constant 0 : i32
    return %c0_i32, %c0_i32_0 : i32, i32
  }
  func.func @transform_3(%arg0: i32, %arg1: i32) -> (i32, i32) {
    %c0_i32 = arith.constant 0 : i32
    %c0_i32_0 = arith.constant 0 : i32
    %c0_i32_1 = arith.constant 0 : i32
    return %c0_i32, %c0_i32_0 : i32, i32
  }
  func.func @transform_4(%arg0: i32, %arg1: i32) -> (i32, i32) {
    %c0_i32 = arith.constant 0 : i32
    %c0_i32_0 = arith.constant 0 : i32
    %c0_i32_1 = arith.constant 0 : i32
    return %c0_i32, %c0_i32_0 : i32, i32
  }
  func.func @transform_5(%arg0: i32, %arg1: i32) -> (i32, i32, i32) {
    %c0_i32 = arith.constant 0 : i32
    %c0_i32_0 = arith.constant 0 : i32
    return %arg0, %c0_i32, %arg1 : i32, i32, i32
  }
}

</mosaic_0001>

<llo_original>
// kernel: conv_mlp_forward.1
$region0: #{conv_mlp_forward.1}
  #allocation0 [shape = 'u32[]', space=smem, size = 0x4, offset = 0x4, fixed_abs, tag = 'smem constant byte address 0x4 - core index']
  #allocation1 [shape = 'u32[144,128]{1,0:T(1,128)}', space=vmem, size = 0x12000, scoped, tag = 'internal scratch']
  %s0 = inlined_call_operand.vmem [shape: f32[2,4,16], index: 0, kind: input, shape index: {}]
  %s1 = inlined_call_operand.vmem [shape: f32[32,4], index: 1, kind: input, shape index: {}]
  %s2 = inlined_call_operand.vmem [shape: f32[32,1], index: 2, kind: input, shape index: {}]
  %s3 = inlined_call_operand.vmem [shape: f32[16,32], index: 3, kind: input, shape index: {}]
  %s4 = inlined_call_operand.vmem [shape: f32[16,1], index: 4, kind: input, shape index: {}]
  %s5 = inlined_call_operand.hbm [shape: f32[2,16,16], index: 5, kind: output, shape index: {}]
  %s6 = sld [smem:[#allocation0]]
  $region53: #{conv_mlp_forward.1} parent=0
    _
  %s8 = ssub.s32 1, %s6
  %s9 = scalar_select 0, %s8, %s6
  $region1: #{conv_mlp_forward.1} parent=0
    #allocation2 [shape = 'u8[16384]{0}', space=vmem, size = 0x4000, scoped, tag = 'output window, operand 0']
    #allocation3 [shape = 's32[2]{0}', space=sflag, size = 0x8, scoped, tag = 'scoped memory for conv_mlp_forward.1']
    %10 = vsyncpa [#allocation3], 0
    %s11 = scalar_lea.sflag [#allocation3], 1
    %12 = vsyncpa %s11, 0
    loop: start=0, step=1, limit=4
    $region2: #{conv_mlp_forward.1} parent=1 // loop_pre_header
      _
    $region3: #{conv_mlp_forward.1} parent=1 // loop_header
      %s14 = sphi 0, %s18
      %p15 = scmp.ge.s32.totalorder %s14, 4
      %s21 = sphi 0, %s33
      %s22 = sphi 0, %s29
      %s23 = sphi 0, %s21
      %s24 = sphi 0, %s22
      %s25 = sphi 0, %s23
      %s26 = sphi 0, %s24
      %s38 = sphi 0, %s40
      %s41 = sphi 0, %s38
      %s42 = sphi 0, %s41
      %s58 = sphi 0, %s42
      %s62 = sphi 0, %s62
      %s64 = sphi 0, %s62
      %s65 = sphi 0, %s64
      %s79 = sphi 0, %s65
      %s83 = sphi 0, %s83
      %s85 = sphi 0, %s83
      %s86 = sphi 0, %s85
      %s100 = sphi 0, %s86
      %s104 = sphi 0, %s104
      %s106 = sphi 0, %s104
      %s107 = sphi 0, %s106
      %s121 = sphi 0, %s107
      %s125 = sphi 0, %s125
      %s127 = sphi 0, %s125
      %s128 = sphi 0, %s127
      %s142 = sphi 0, %s128
      %s150 = sphi 0, %s152
      %s153 = sphi 0, %s150
      %s154 = sphi 0, %s153
      %s170 = sphi 0, %s154
    $region4: #{conv_mlp_forward.1} parent=1 // loop_header_branch
      %17 = sbr.rel (%p15) target = $region8
    $region5: #{conv_mlp_forward.1} parent=1 // loop_body
      %s19 = ssub.s32 %s14, 1
      %s20 = ssub.s32 %s14, 2
      %s27 = sadd.s32 1, %s22
      %p28 = scmp.ge.s32.totalorder %s27, 1
      %s29 = scalar_select %p28, 0, %s27
      %s30 = sadd.s32 1, %s21
      %s31 = scalar_select %p28, %s30, %s21
      %p32 = scmp.ge.s32.totalorder %s31, 2
      %s33 = scalar_select %p32, 0, %s31
      %s34 = ssub.s32 %s21, %s33
      %s35 = ssub.s32 %s22, %s29
      %s36 = sor.u32 %s34, %s35
      %p37 = scmp.eq.s32.totalorder %s36, 0
      %s39 = sadd.s32 %s38, 1
      %s40 = scalar_select %p37, %s38, %s39
      %p43 = pneg %p37
      %p44 = scmp.eq.s32.totalorder %s14, 1
      %p45 = por %p43, %p44
      %p46 = scmp.ne.s32.totalorder %s38, %s41
      %p47 = scmp.eq.s32.totalorder %s14, 0
      %p48 = por %p46, %p47
      %p49 = scmp.ne.s32.totalorder %s38, %s41
      %p50 = scmp.eq.s32.totalorder %s19, 1
      %p51 = por %p49, %p50
      %p52 = scmp.ne.s32.totalorder %s41, %s42
      %p53 = scmp.eq.s32.totalorder %s19, 0
      %p54 = por %p52, %p53
      %p55 = scmp.ne.s32.totalorder %s41, %s42
      %p56 = scmp.eq.s32.totalorder %s20, 1
      %p57 = por %p55, %p56
      %p59 = scmp.ne.s32.totalorder %s42, %s58
      %p60 = scmp.eq.s32.totalorder %s20, 0
      %p61 = por %p59, %p60
      %s63 = sadd.s32 %s62, 1
      %p66 = scmp.eq.s32.totalorder %s14, 1
      %p67 = scmp.ne.s32.totalorder %s62, %s64
      %p68 = scmp.eq.s32.totalorder %s14, 0
      %p69 = por %p67, %p68
      %p70 = scmp.ne.s32.totalorder %s62, %s64
      %p71 = scmp.eq.s32.totalorder %s19, 1
      %p72 = por %p70, %p71
      %p73 = scmp.ne.s32.totalorder %s64, %s65
      %p74 = scmp.eq.s32.totalorder %s19, 0
      %p75 = por %p73, %p74
      %p76 = scmp.ne.s32.totalorder %s64, %s65
      %p77 = scmp.eq.s32.totalorder %s20, 1
      %p78 = por %p76, %p77
      %p80 = scmp.ne.s32.totalorder %s65, %s79
      %p81 = scmp.eq.s32.totalorder %s20, 0
      %p82 = por %p80, %p81
      %s84 = sadd.s32 %s83, 1
      %p87 = scmp.eq.s32.totalorder %s14, 1
      %p88 = scmp.ne.s32.totalorder %s83, %s85
      %p89 = scmp.eq.s32.totalorder %s14, 0
      %p90 = por %p88, %p89
      %p91 = scmp.ne.s32.totalorder %s83, %s85
      %p92 = scmp.eq.s32.totalorder %s19, 1
      %p93 = por %p91, %p92
      %p94 = scmp.ne.s32.totalorder %s85, %s86
      %p95 = scmp.eq.s32.totalorder %s19, 0
      %p96 = por %p94, %p95
      %p97 = scmp.ne.s32.totalorder %s85, %s86
      %p98 = scmp.eq.s32.totalorder %s20, 1
      %p99 = por %p97, %p98
      %p101 = scmp.ne.s32.totalorder %s86, %s100
      %p102 = scmp.eq.s32.totalorder %s20, 0
      %p103 = por %p101, %p102
      %s105 = sadd.s32 %s104, 1
      %p108 = scmp.eq.s32.totalorder %s14, 1
      %p109 = scmp.ne.s32.totalorder %s104, %s106
      %p110 = scmp.eq.s32.totalorder %s14, 0
      %p111 = por %p109, %p110
      %p112 = scmp.ne.s32.totalorder %s104, %s106
      %p113 = scmp.eq.s32.totalorder %s19, 1
      %p114 = por %p112, %p113
      %p115 = scmp.ne.s32.totalorder %s106, %s107
      %p116 = scmp.eq.s32.totalorder %s19, 0
      %p117 = por %p115, %p116
      %p118 = scmp.ne.s32.totalorder %s106, %s107
      %p119 = scmp.eq.s32.totalorder %s20, 1
      %p120 = por %p118, %p119
      %p122 = scmp.ne.s32.totalorder %s107, %s121
      %p123 = scmp.eq.s32.totalorder %s20, 0
      %p124 = por %p122, %p123
      %s126 = sadd.s32 %s125, 1
      %p129 = scmp.eq.s32.totalorder %s14, 1
      %p130 = scmp.ne.s32.totalorder %s125, %s127
      %p131 = scmp.eq.s32.totalorder %s14, 0
      %p132 = por %p130, %p131
      %p133 = scmp.ne.s32.totalorder %s125, %s127
      %p134 = scmp.eq.s32.totalorder %s19, 1
      %p135 = por %p133, %p134
      %p136 = scmp.ne.s32.totalorder %s127, %s128
      %p137 = scmp.eq.s32.totalorder %s19, 0
      %p138 = por %p136, %p137
      %p139 = scmp.ne.s32.totalorder %s127, %s128
      %p140 = scmp.eq.s32.totalorder %s20, 1
      %p141 = por %p139, %p140
      %p143 = scmp.ne.s32.totalorder %s128, %s142
      %p144 = scmp.eq.s32.totalorder %s20, 0
      %p145 = por %p143, %p144
      %s146 = ssub.s32 %s21, %s33
      %s147 = ssub.s32 %s22, %s29
      %s148 = sor.u32 %s146, %s147
      %p149 = scmp.eq.s32.totalorder %s148, 0
      %s151 = sadd.s32 %s150, 1
      %s152 = scalar_select %p149, %s150, %s151
      %p155 = pneg %p149
      %p156 = scmp.eq.s32.totalorder %s14, 1
      %p157 = por %p155, %p156
      %p158 = scmp.ne.s32.totalorder %s150, %s153
      %p159 = scmp.eq.s32.totalorder %s14, 0
      %p160 = por %p158, %p159
      %p161 = scmp.ne.s32.totalorder %s150, %s153
      %p162 = scmp.eq.s32.totalorder %s19, 1
      %p163 = por %p161, %p162
      %p164 = scmp.ne.s32.totalorder %s153, %s154
      %p165 = scmp.eq.s32.totalorder %s19, 0
      %p166 = por %p164, %p165
      %p167 = scmp.ne.s32.totalorder %s153, %s154
      %p168 = scmp.eq.s32.totalorder %s20, 1
      %p169 = por %p167, %p168
      %p171 = scmp.ne.s32.totalorder %s154, %s170
      %p172 = scmp.eq.s32.totalorder %s20, 0
      %p173 = por %p171, %p172
      %p174 = scmp.le.s32.totalorder 1, %s14
      %p175 = scmp.lt.s32.totalorder %s14, 3
      %p176 = pnand %p174, %p175
      %p177 = pneg %p176
      // Predicated region
      $region9: #{conv_mlp_forward.1} parent=5 // pred_check
        _
      $region10: #{conv_mlp_forward.1} parent=5 // pred_check_branch
        %179 = sbr.rel (%p176) target = $region12
      $region11: #{conv_mlp_forward.1} parent=5 // pred_region
        %s180 = ssub.s32 %s14, 1
        // Predicated region
        $region13: #{conv_mlp_forward.1} parent=11 // pred_check
          %p181 = pneg %p75
        $region14: #{conv_mlp_forward.1} parent=11 // pred_check_branch
          %183 = sbr.rel (%p181) target = $region16
        $region15: #{conv_mlp_forward.1} parent=11 // pred_region
          _
        $region16: #{conv_mlp_forward.1} parent=11 // pred_fallthru
          _
        // Predicated region
        $region17: #{conv_mlp_forward.1} parent=11 // pred_check
          %p184 = pneg %p96
        $region18: #{conv_mlp_forward.1} parent=11 // pred_check_branch
          %186 = sbr.rel (%p184) target = $region20
        $region19: #{conv_mlp_forward.1} parent=11 // pred_region
          _
        $region20: #{conv_mlp_forward.1} parent=11 // pred_fallthru
          _
        // Predicated region
        $region21: #{conv_mlp_forward.1} parent=11 // pred_check
          %p187 = pneg %p117
        $region22: #{conv_mlp_forward.1} parent=11 // pred_check_branch
          %189 = sbr.rel (%p187) target = $region24
        $region23: #{conv_mlp_forward.1} parent=11 // pred_region
          _
        $region24: #{conv_mlp_forward.1} parent=11 // pred_fallthru
          _
        // Predicated region
        $region25: #{conv_mlp_forward.1} parent=11 // pred_check
          %p190 = pneg %p138
        $region26: #{conv_mlp_forward.1} parent=11 // pred_check_branch
          %192 = sbr.rel (%p190) target = $region28
        $region27: #{conv_mlp_forward.1} parent=11 // pred_region
          _
        $region28: #{conv_mlp_forward.1} parent=11 // pred_fallthru
          _
      $region12: #{conv_mlp_forward.1} parent=5 // pred_fallthru
        _
      %p193 = scmp.lt.s32.totalorder %s14, 2
      // Predicated region
      $region29: #{conv_mlp_forward.1} parent=5 // pred_check
        %p194 = pneg %p193
      $region30: #{conv_mlp_forward.1} parent=5 // pred_check_branch
        %196 = sbr.rel (%p194) target = $region32
      $region31: #{conv_mlp_forward.1} parent=5 // pred_region
        // Predicated region
        $region33: #{conv_mlp_forward.1} parent=31 // pred_check
          %p197 = pneg %p48
        $region34: #{conv_mlp_forward.1} parent=31 // pred_check_branch
          %199 = sbr.rel (%p197) target = $region36
        $region35: #{conv_mlp_forward.1} parent=31 // pred_region
          %p200 = scmp.lt.s32.totalorder %s21, 1
          %s201 = scalar_select %p200, %s21, 1
          %p202 = scmp.lt.s32.totalorder %s22, 0
          %s203 = scalar_select %p202, %s22, 0
          %s204 = sadd.s32 %s203, %s201
          %s205 = smul.addr %s204, 4
          %s206 = scalar_lea.vmem %s0, %s205
        $region36: #{conv_mlp_forward.1} parent=31 // pred_fallthru
          _
      $region32: #{conv_mlp_forward.1} parent=5 // pred_fallthru
        _
      %p207 = scmp.le.s32.totalorder 1, %s14
      %p208 = scmp.lt.s32.totalorder %s14, 3
      %p209 = pnand %p207, %p208
      %p210 = pneg %p209
      // Predicated region
      $region37: #{conv_mlp_forward.1} parent=5 // pred_check
        _
      $region38: #{conv_mlp_forward.1} parent=5 // pred_check_branch
        %212 = sbr.rel (%p209) target = $region40
      $region39: #{conv_mlp_forward.1} parent=5 // pred_region
        %s213 = ssub.s32 %s14, 1
        %p214 = scmp.lt.s32.totalorder %s23, 1
        %s215 = scalar_select %p214, %s23, 1
        %p216 = scmp.lt.s32.totalorder %s24, 0
        %s217 = scalar_select %p216, %s24, 0
        %s218 = sadd.s32 %s217, %s215
        %s219 = smul.addr %s218, 4
        %s220 = scalar_lea.vmem %s0, %s219
        %p221 = pneg %p54
        %p222 = pneg %p51
        %p223 = pneg %p75
        %p224 = pneg %p72
        %p225 = pneg %p96
        %p226 = pneg %p93
        %p227 = pneg %p117
        %p228 = pneg %p114
        %p229 = pneg %p138
        %p230 = pneg %p135
        %p231 = pneg %p166
        %p232 = pneg %p163
        %s233 = sand.u32 %s153, 1
        %s234 = scalar_lea.sflag [#allocation3], %s233
        %s235 = sand.u32 %s153, 1
        %s236 = smul.addr %s235, 16
        %s237 = scalar_lea.vmem [#allocation2], %s236
        %p238 = scmp.lt.s32.totalorder %s23, 1
        %s239 = scalar_select %p238, %s23, 1
        %p240 = scmp.lt.s32.totalorder %s24, 0
        %s241 = scalar_select %p240, %s24, 0
        %s242 = sadd.s32 %s241, %s239
        %s243 = smul.addr %s242, 4
        %s244 = scalar_lea.vmem %s0, %s243
        %v245 = vld [vmem:[%s1] sm:$0xff]
        %v246 = vld [vmem:[%s1 + $0x8] sm:$0xff]
        %v247 = vld [vmem:[%s1 + $0x10] sm:$0xff]
        %v248 = vld [vmem:[%s1 + $0x18] sm:$0xff]
        %v249 = vld [vmem:[%s3] sm:$0xff]
        %v250 = vld [vmem:[%s3 + $0x8] sm:$0xff]
        %v251 = vld [vmem:[%s2] sm:$0xff]
        %v252 = vld [vmem:[%s2 + $0x8] sm:$0xff]
        %v253 = vld [vmem:[%s2 + $0x10] sm:$0xff]
        %v254 = vld [vmem:[%s2 + $0x18] sm:$0xff]
        %v255 = vld [vmem:[%s4] sm:$0xff]
        %v256 = vld [vmem:[%s4 + $0x8] sm:$0xff]
        %v257 = vld [vmem:[%s244] sm:$0xf]
        %259 = vset.pattern.permute.xlu0 0
        %260 = vperm.xlu0 %259, %v251
        %v261 = vpop.permute.xlu0 %260
        %264 = vset.pattern.permute.xlu0 0
        %265 = vperm.xlu0 %264, %v252
        %v266 = vpop.permute.xlu0 %265
        %269 = vset.pattern.permute.xlu0 0
        %270 = vperm.xlu0 %269, %v253
        %v271 = vpop.permute.xlu0 %270
        %274 = vset.pattern.permute.xlu0 0
        %275 = vperm.xlu0 %274, %v254
        %v276 = vpop.permute.xlu0 %275
        %vm278 = vcmask 31744
        %v280 = vsel %vm278, %v245, 0
        %v283 = vsel %vm278, %v246, 0
        %v286 = vsel %vm278, %v247, 0
        %v289 = vsel %vm278, %v248, 0
        %vm291 = vcmask 1043456
        %v293 = vsel %vm291, %v257, 0
        %295 = vmatprep.subr.mxu0 0.0
        %296 = vmatpush1.msra.mxu0 %v293
        %297 = vmatprep.subr.mxu0 0.0
        %298 = vmatpush1.msra.mxu0 0.0
        %299 = vmatprep.subr.mxu0 0.0
        %300 = vmatpush1.msra.mxu0 0.0
        %301 = vmatprep.subr.mxu0 0.0
        %302 = vmatpush1.msra.mxu0 0.0
        %303 = vmatprep.subr.mxu0 0.0
        %304 = vmatpush1.msra.mxu0 0.0
        %305 = vmatprep.subr.mxu0 0.0
        %306 = vmatpush1.msra.mxu0 0.0
        %307 = vmatprep.subr.mxu0 0.0
        %308 = vmatpush1.msra.mxu0 0.0
        %309 = vmatprep.subr.mxu0 0.0
        %310 = vmatpush1.msra.mxu0 0.0
        %311 = vmatprep.subr.mxu0 0.0
        %312 = vmatpush1.msra.mxu0 0.0
        %313 = vmatprep.subr.mxu0 0.0
        %314 = vmatpush1.msra.mxu0 0.0
        %315 = vmatprep.subr.mxu0 0.0
        %316 = vmatpush1.msra.mxu0 0.0
        %317 = vmatprep.subr.mxu0 0.0
        %318 = vmatpush1.msra.mxu0 0.0
        %319 = vmatprep.subr.mxu0 0.0
        %320 = vmatpush1.msra.mxu0 0.0
        %321 = vmatprep.subr.mxu0 0.0
        %322 = vmatpush1.msra.mxu0 0.0
        %323 = vmatprep.subr.mxu0 0.0
        %324 = vmatpush1.msra.mxu0 0.0
        %325 = vmatprep.subr.mxu0 0.0
        %326 = vmatpush1.msra.mxu0 0.0
        %327 = vmatprep.subr.mxu0 0.0
        %328 = vmatpush1.msra.mxu0 0.0
        %329 = vmatprep.subr.mxu0 0.0
        %330 = vmatpush1.msra.mxu0 0.0
        %331 = vmatprep.subr.mxu0 0.0
        %332 = vmatpush1.msra.mxu0 0.0
        %333 = vmatprep.subr.mxu0 0.0
        %334 = vmatpush1.msra.mxu0 0.0
        %335 = vmatprep.subr.mxu0 0.0
        %336 = vmatpush1.msra.mxu0 0.0
        %337 = vmatprep.subr.mxu0 0.0
        %338 = vmatpush1.msra.mxu0 0.0
        %339 = vmatprep.subr.mxu0 0.0
        %340 = vmatpush1.msra.mxu0 0.0
        %341 = vmatprep.subr.mxu0 0.0
        %342 = vmatpush1.msra.mxu0 0.0
        %343 = vmatprep.subr.mxu0 0.0
        %344 = vmatpush1.msra.mxu0 0.0
        %345 = vmatprep.subr.mxu0 0.0
        %346 = vmatpush1.msra.mxu0 0.0
        %347 = vmatprep.subr.mxu0 0.0
        %348 = vmatpush1.msra.mxu0 0.0
        %349 = vmatprep.subr.mxu0 0.0
        %350 = vmatpush1.msra.mxu0 0.0
        %351 = vmatprep.subr.mxu0 0.0
        %352 = vmatpush1.msra.mxu0 0.0
        %353 = vmatprep.subr.mxu0 0.0
        %354 = vmatpush1.msra.mxu0 0.0
        %355 = vmatprep.subr.mxu0 0.0
        %356 = vmatpush1.msra.mxu0 0.0
        %357 = vmatprep.subr.mxu0 0.0
        %358 = vmatpush1.msra.mxu0 0.0
        %359 = vmatprep.mubr.f32.mxu0 0.0
        %360 = vmatmul.mubr.f32.gmra.mrb[0].mxu0 %v280
        %v361 = vpop.f32.mrb[0].mxu0
        %v362 = vadd.f32 %v261, %v361
        %v363 = vpop.f32.mrb[0].mxu0
        %364 = vmatprep.mubr.f32.mxu0 0.0
        %365 = vmatmul.mubr.f32.gmra.mrb[0].mxu0 %v283
        %v366 = vpop.f32.mrb[0].mxu0
        %v367 = vadd.f32 %v266, %v366
        %v368 = vpop.f32.mrb[0].mxu0
        %369 = vmatprep.mubr.f32.mxu0 0.0
        %370 = vmatmul.mubr.f32.gmra.mrb[0].mxu0 %v286
        %v371 = vpop.f32.mrb[0].mxu0
        %v372 = vadd.f32 %v271, %v371
        %v373 = vpop.f32.mrb[0].mxu0
        %374 = vmatprep.mubr.f32.mxu0 0.0
        %375 = vmatmul.mubr.f32.gmra.mrb[0].mxu0 %v289
        %v376 = vpop.f32.mrb[0].mxu0
        %v377 = vadd.f32 %v276, %v376
        %v378 = vpop.f32.mrb[0].mxu0
        %379 = vdwg.mxu0
        %v380 = vmax.f32 %v362, 0.0
        %v381 = vmax.f32 %v367, 0.0
        %v382 = vmax.f32 %v372, 0.0
        %v383 = vmax.f32 %v377, 0.0
        %385 = vset.pattern.permute.xlu0 0
        %386 = vperm.xlu0 %385, %v255
        %v387 = vpop.permute.xlu0 %386
        %390 = vset.pattern.permute.xlu0 0
        %391 = vperm.xlu0 %390, %v256
        %v392 = vpop.permute.xlu0 %391
        %vm394 = vcmask 261120
        %v396 = vsel %vm394, %v249, 0
        %v399 = vsel %vm394, %v250, 0
        %401 = vmatprep.subr.mxu0 0.0
        %402 = vmatpush1.msra.mxu0 %v380
        %403 = vmatprep.subr.mxu0 0.0
        %404 = vmatpush1.msra.mxu0 %v381
        %405 = vmatprep.subr.mxu0 0.0
        %406 = vmatpush1.msra.mxu0 %v382
        %407 = vmatprep.subr.mxu0 0.0
        %408 = vmatpush1.msra.mxu0 %v383
        %409 = vmatprep.subr.mxu0 0.0
        %410 = vmatpush1.msra.mxu0 0.0
        %411 = vmatprep.subr.mxu0 0.0
        %412 = vmatpush1.msra.mxu0 0.0
        %413 = vmatprep.subr.mxu0 0.0
        %414 = vmatpush1.msra.mxu0 0.0
        %415 = vmatprep.subr.mxu0 0.0
        %416 = vmatpush1.msra.mxu0 0.0
        %417 = vmatprep.subr.mxu0 0.0
        %418 = vmatpush1.msra.mxu0 0.0
        %419 = vmatprep.subr.mxu0 0.0
        %420 = vmatpush1.msra.mxu0 0.0
        %421 = vmatprep.subr.mxu0 0.0
        %422 = vmatpush1.msra.mxu0 0.0
        %423 = vmatprep.subr.mxu0 0.0
        %424 = vmatpush1.msra.mxu0 0.0
        %425 = vmatprep.subr.mxu0 0.0
        %426 = vmatpush1.msra.mxu0 0.0
        %427 = vmatprep.subr.mxu0 0.0
        %428 = vmatpush1.msra.mxu0 0.0
        %429 = vmatprep.subr.mxu0 0.0
        %430 = vmatpush1.msra.mxu0 0.0
        %431 = vmatprep.subr.mxu0 0.0
        %432 = vmatpush1.msra.mxu0 0.0
        %433 = vmatprep.subr.mxu0 0.0
        %434 = vmatpush1.msra.mxu0 0.0
        %435 = vmatprep.subr.mxu0 0.0
        %436 = vmatpush1.msra.mxu0 0.0
        %437 = vmatprep.subr.mxu0 0.0
        %438 = vmatpush1.msra.mxu0 0.0
        %439 = vmatprep.subr.mxu0 0.0
        %440 = vmatpush1.msra.mxu0 0.0
        %441 = vmatprep.subr.mxu0 0.0
        %442 = vmatpush1.msra.mxu0 0.0
        %443 = vmatprep.subr.mxu0 0.0
        %444 = vmatpush1.msra.mxu0 0.0
        %445 = vmatprep.subr.mxu0 0.0
        %446 = vmatpush1.msra.mxu0 0.0
        %447 = vmatprep.subr.mxu0 0.0
        %448 = vmatpush1.msra.mxu0 0.0
        %449 = vmatprep.subr.mxu0 0.0
        %450 = vmatpush1.msra.mxu0 0.0
        %451 = vmatprep.subr.mxu0 0.0
        %452 = vmatpush1.msra.mxu0 0.0
        %453 = vmatprep.subr.mxu0 0.0
        %454 = vmatpush1.msra.mxu0 0.0
        %455 = vmatprep.subr.mxu0 0.0
        %456 = vmatpush1.msra.mxu0 0.0
        %457 = vmatprep.subr.mxu0 0.0
        %458 = vmatpush1.msra.mxu0 0.0
        %459 = vmatprep.subr.mxu0 0.0
        %460 = vmatpush1.msra.mxu0 0.0
        %461 = vmatprep.subr.mxu0 0.0
        %462 = vmatpush1.msra.mxu0 0.0
        %463 = vmatprep.subr.mxu0 0.0
        %464 = vmatpush1.msra.mxu0 0.0
        %465 = vmatprep.mubr.f32.mxu0 0.0
        %466 = vmatmul.mubr.f32.gmra.mrb[0].mxu0 %v396
        %v467 = vpop.f32.mrb[0].mxu0
        %v468 = vadd.f32 %v387, %v467
        %v469 = vpop.f32.mrb[0].mxu0
        %470 = vmatprep.mubr.f32.mxu0 0.0
        %471 = vmatmul.mubr.f32.gmra.mrb[0].mxu0 %v399
        %v472 = vpop.f32.mrb[0].mxu0
        %v473 = vadd.f32 %v392, %v472
        %v474 = vpop.f32.mrb[0].mxu0
        %475 = vdwg.mxu0
        %vm476 = vcmask 130048
        %477 = vst.msk [vmem:[%s237] sm:$0xff] %vm476, %v468
        %478 = vst.msk [vmem:[%s237 + $0x8] sm:$0xff] %vm476, %v473
        %s479 = sand.u32 %s153, 1
        %s480 = scalar_lea.sflag [#allocation3], %s479
        %s481 = sand.u32 %s153, 1
        %s482 = smul.addr %s481, 16
        %s483 = scalar_lea.vmem [#allocation2], %s482
        // Predicated region
        $region41: #{conv_mlp_forward.1} parent=39 // pred_check
          %p484 = pneg %p163
        $region42: #{conv_mlp_forward.1} parent=39 // pred_check_branch
          %486 = sbr.rel (%p484) target = $region44
        $region43: #{conv_mlp_forward.1} parent=39 // pred_region
          %s488 = ssub.s32 256, 256
          %489 = vsyncadd %s480, %s488
          %s490 = smul.addr %s23, 2
          %s491 = sadd.s32 %s24, %s490
          %s492 = smul.addr %s491, 128
          %s493 = scalar_lea.hbm %s5, %s492
          %s494 = sshll.u32 %s483, 4
          %s495 = int_to_ptr.vmem [resolvable:$true] %s494
          %500 = dma.vmem_to_hbm [thread:$0]  %s495, 256, %s493, %s480, 128, 128, 8
        $region44: #{conv_mlp_forward.1} parent=39 // pred_fallthru
          _
      $region40: #{conv_mlp_forward.1} parent=5 // pred_fallthru
        _
      %p501 = scmp.le.s32.totalorder 2, %s14
      // Predicated region
      $region45: #{conv_mlp_forward.1} parent=5 // pred_check
        %p502 = pneg %p501
      $region46: #{conv_mlp_forward.1} parent=5 // pred_check_branch
        %504 = sbr.rel (%p502) target = $region48
      $region47: #{conv_mlp_forward.1} parent=5 // pred_region
        %s505 = ssub.s32 %s14, 2
        // Predicated region
        $region49: #{conv_mlp_forward.1} parent=47 // pred_check
          %p506 = pneg %p169
        $region50: #{conv_mlp_forward.1} parent=47 // pred_check_branch
          %508 = sbr.rel (%p506) target = $region52
        $region51: #{conv_mlp_forward.1} parent=47 // pred_region
          %s509 = sand.u32 %s154, 1
          %s510 = scalar_lea.sflag [#allocation3], %s509
          %s511 = sand.u32 %s154, 1
          %s512 = smul.addr %s511, 16
          %s513 = scalar_lea.vmem [#allocation2], %s512
          %514 = dma.done %s510, 256
        $region52: #{conv_mlp_forward.1} parent=47 // pred_fallthru
          _
      $region48: #{conv_mlp_forward.1} parent=5 // pred_fallthru
        _
    $region6: #{conv_mlp_forward.1} parent=1 // loop_footer
      %s18 = sadd.s32 1, %s14
    $region7: #{conv_mlp_forward.1} parent=1 // loop_footer_branch
      %13 = sbr.rel target = $region3
    $region8: #{conv_mlp_forward.1} parent=1 // loop_exit
      _
    %515 = vsyncpa [#allocation3], 1
    %s516 = scalar_lea.sflag [#allocation3], 1
    %517 = vsyncpa %s516, 1

</llo_original>
